<compile_context>
chip_gen: v6e
topology: v6e:2x2x1
jax: 0.10.0
libtpu: 0.0.40
codegen_flags: <defaults>
</compile_context>

<pallas_src>
import functools

import numpy as np
import jax
import jax.numpy as jnp
from jax import lax
from jax.experimental import pallas as pl
from jax.experimental.pallas import tpu as pltpu


def _round_up(n, m):
    return ((n + m - 1) // m) * m


def _vmem_capacity_bytes():
    """Physical VMEM of the local TPU (conservative default if unknown)."""
    try:
        info = pltpu.get_tpu_info()
        cap = getattr(info, "vmem_capacity_bytes", None)
        if cap:
            return int(cap)
    except Exception:
        pass
    return 64 * 1024 * 1024  # v7x per-TensorCore VMEM (smallest generation)


def _default_block_batch():
    """256 rows on v6e/v7x (256-wide MXU), 128 on v5e and older (128-wide)."""
    try:
        kind = jax.devices()[0].device_kind.lower()
    except Exception:
        kind = ""
    if any(g in kind for g in ("v2", "v3", "v4", "v5")):
        return 128
    return 256


def _fixed_point_kernel(x_ref, w_ref, o_ref, *, tolerance, max_iterations,
                        matmul_dtype, steps_per_check):
    """Whole fixed-point solve for one batch tile.

    Semantics match the PyTorch loop: at least one iteration; the error
    ||z_k - z_{k+1}||_F is checked (as a squared norm, no sqrt on the critical
    path) and the loop stops when it drops below tolerance or after
    max_iterations updates (plus at most steps_per_check-1 extra updates,
    which only move z closer to the fixed point).
    """
    tol2 = float(tolerance) ** 2                       # static Python scalar
    x = x_ref[...].astype(jnp.float32)                 # (TB, Fp) f32

    # Hoisted first iteration: z0 = 0  =>  z1 = tanh(0 @ W^T + x) = tanh(x),
    # err_1^2 = ||z0 - z1||^2 = sum(z1^2).
    z1 = jnp.tanh(x)
    err2_1 = jnp.sum(z1 * z1)

    def step(z):
        # Weight was pre-transposed + pre-cast in the wrapper: this is a
        # canonical (TB,K)@(K,N) MXU matmul with no per-iteration cast or
        # transpose of the (F,F) slab.  The weight stays in VMEM (read from
        # its ref each iteration, not pinned into vregs).
        zz = jnp.dot(z.astype(matmul_dtype), w_ref[...],
                     preferred_element_type=jnp.float32)
        return jnp.tanh(zz + x)                        # elementwise in f32

    def cond(carry):
        i, _z, err2 = carry
        return jnp.logical_and(i < max_iterations, err2 >= tol2)

    def body(carry):
        i, z, _err2 = carry
        z_prev = z
        for _ in range(steps_per_check):               # static unroll (1 or 2)
            z_prev, z = z, step(z)
        d = z_prev - z
        return (i + steps_per_check, z, jnp.sum(d * d))

    _, z_final, _ = lax.while_loop(cond, body, (jnp.int32(1), z1, err2_1))
    o_ref[...] = z_final.astype(o_ref.dtype)


def fixed_point_layer(x, weight, *, tolerance=1e-4, max_iterations=50,
                      matmul_dtype=jnp.bfloat16, block_batch=None):
    """x: (B, F) float32; weight: (F, F) as in nn.Linear (out, in), no bias."""
    B, F = x.shape
    assert weight.shape == (F, F)
    assert max_iterations >= 1, "hoisted first iteration assumes >= 1 iteration"

    # ---- tiling ------------------------------------------------------------
    F_pad = _round_up(F, 128)                  # lane-dense feature dim
    bb = int(block_batch) if block_batch is not None else _default_block_batch()
    # >= 2 grid steps whenever the batch allows it, so the "parallel" batch
    # axis actually gives both v7x TensorCores work.
    half = _round_up(-(-B // 2), 8)            # ceil(B/2) rounded to sublanes
    TB = max(8, min(bb, half, _round_up(B, 8)))
    B_pad = _round_up(B, TB)
    padded = (B_pad, F_pad) != (B, F)

    # ---- operand prep (all one-time wrapper work) ---------------------------
    x_p = jnp.pad(x, ((0, B_pad - B), (0, F_pad - F))) if padded else x
    # Pre-transpose (z @ W^T == z @ (W^T), canonical contraction) and pre-cast
    # to the MXU operand dtype so the kernel's while-body touches W only
    # through the MXU.
    w_t = weight.T
    if F_pad != F:
        w_t = jnp.pad(w_t, ((0, F_pad - F), (0, F_pad - F)))
    w_p = w_t.astype(matmul_dtype)

    steps_per_check = 2 if max_iterations >= 4 else 1
    kernel = functools.partial(
        _fixed_point_kernel,
        tolerance=float(tolerance),            # static Python scalars, NOT jnp
        max_iterations=int(max_iterations),
        matmul_dtype=matmul_dtype,
        steps_per_check=steps_per_check,
    )

    cap = _vmem_capacity_bytes()
    w_itemsize = jnp.dtype(matmul_dtype).itemsize

    def _run(single_buffer_weight):
        if single_buffer_weight:
            # Block index is always (0,0): double-buffering buys nothing, so
            # keep a single resident copy of the weight.
            w_spec = pl.BlockSpec((F_pad, F_pad), lambda i: (0, 0),
                                  pipeline_mode=pl.Buffered(1))
            w_bufs = 1
        else:
            w_spec = pl.BlockSpec((F_pad, F_pad), lambda i: (0, 0))
            w_bufs = 2

        # VMEM estimate: resident weight + double-buffered x/out tiles +
        # in-loop f32/bf16 temporaries (x copy, z, z_next, d, matmul result,
        # bf16 cast of z).
        est = (w_bufs * F_pad * F_pad * w_itemsize
               + 2 * TB * F_pad * 4                 # x tile, 2 buffers
               + 2 * TB * F_pad * 4                 # out tile, 2 buffers
               + 6 * TB * F_pad * 4)                # loop-body temporaries
        # Generation-aware budget: ~85% of physical VMEM (128 MiB on v5e/v6e,
        # 64 MiB per core on v7x), never below a 32 MiB floor unless the chip
        # itself is smaller.
        vmem_limit = int(min(int(0.85 * cap), max(2 * est, 32 * 1024 * 1024)))

        return pl.pallas_call(
            kernel,
            grid=(B_pad // TB,),
            in_specs=[
                pl.BlockSpec((TB, F_pad), lambda i: (i, 0)),   # batch tile of x
                w_spec,                                        # weight, resident
            ],
            out_specs=pl.BlockSpec((TB, F_pad), lambda i: (i, 0)),
            out_shape=jax.ShapeDtypeStruct((B_pad, F_pad), x.dtype),
            compiler_params=pltpu.CompilerParams(
                dimension_semantics=("parallel",),  # independent batch tiles
                vmem_limit_bytes=vmem_limit,
            ),
        )(x_p, w_p)

    try:
        out = _run(True)
    except Exception:
        # This JAX version rejected pl.Buffered(1) on a pallas_call BlockSpec;
        # fall back to the default double-buffered weight.
        out = _run(False)

    return out[:B, :F] if padded else out


def _reference(x, weight, tolerance=1e-4, max_iterations=50):
    # Plain-JAX emulation of the PyTorch forward (f32 throughout).
    z = jnp.zeros_like(x)
    for _ in range(max_iterations):
        z_next = jnp.tanh(z @ weight.T + x)
        err = jnp.sqrt(jnp.sum((z - z_next) ** 2))
        z = z_next
        if float(err) < tolerance:
            break
    return z


if __name__ == "__main__":
    key = jax.random.PRNGKey(0)
    k_x, k_w = jax.random.split(key)

    B, F = 8, 32  # batch, output_features (small demo shapes)
    x = jax.random.normal(k_x, (B, F), dtype=jnp.float32)

    # nn.Linear default init: U(-1/sqrt(F), 1/sqrt(F)).
    bound = 1.0 / float(np.sqrt(F))
    weight = jax.random.uniform(
        k_w, (F, F), dtype=jnp.float32, minval=-bound, maxval=bound
    )

    ref = _reference(x, weight, tolerance=1e-4, max_iterations=50)

    # Exact-semantics path (f32 MXU).  Tolerance allows for a possible
    # one-step difference at the early-exit boundary (bounded by the 1e-4
    # convergence criterion).
    out_f32 = jax.block_until_ready(
        fixed_point_layer(x, weight, tolerance=1e-4, max_iterations=50,
                          matmul_dtype=jnp.float32)
    )
    assert jnp.allclose(out_f32, ref, atol=2e-4, rtol=1e-4), "f32 mismatch"

    # Fast path (bf16 MXU operands, f32 accumulate/elementwise).
    out_bf16 = jax.block_until_ready(
        fixed_point_layer(x, weight, tolerance=1e-4, max_iterations=50,
                          matmul_dtype=jnp.bfloat16)
    )
    assert jnp.allclose(out_bf16, ref, atol=1e-2, rtol=1e-2), "bf16 mismatch"

    print("KERNEL_OK")
</pallas_src>

<mosaic_0001>
module attributes {stable_mosaic.version = 11 : i64} {
  func.func @_fixed_point_kernel(%arg0: i32, %arg1: memref<8x128xf32, #tpu.memory_space<vmem>>, %arg2: memref<128x128xf32, #tpu.memory_space<vmem>>, %arg3: memref<8x128xf32, #tpu.memory_space<vmem>>) attributes {dimension_semantics = [#tpu.dimension_semantics<parallel>], iteration_bounds = array<i64: 1>, scalar_prefetch = 0 : i64, scratch_operands = 0 : i64, tpu.core_type = #tpu.core_type<tc>, window_params = [{transform_indices = @transform_0, window_bounds = array<i64: 8, 128>}, {pipeline_mode = #tpu.pipeline_mode<synchronous>, transform_indices = @transform_1, window_bounds = array<i64: 128, 128>}, {transform_indices = @transform_2, window_bounds = array<i64: 8, 128>}]} {
    %c0 = arith.constant 0 : index
    %c0_0 = arith.constant 0 : index
    %0 = vector.load %arg1[%c0, %c0_0] : memref<8x128xf32, #tpu.memory_space<vmem>>, vector<8x128xf32>
    %1 = math.tanh %0 : vector<8x128xf32>
    %2 = arith.mulf %1, %1 : vector<8x128xf32>
    %3 = vector.shape_cast %2 : vector<8x128xf32> to vector<1x8x128xf32>
    %cst = arith.constant dense<0.000000e+00> : vector<1xf32>
    %4 = vector.multi_reduction <add>, %3, %cst [1, 2] : vector<1x8x128xf32> to vector<1xf32>
    %5 = vector.shape_cast %4 : vector<1xf32> to vector<1x1x1xf32>
    %6 = vector.extract %5[0, 0, 0] : f32 from vector<1x1x1xf32>
    %c1_i32 = arith.constant 1 : i32
    %7:3 = scf.while (%arg4 = %c1_i32, %arg5 = %1, %arg6 = %6) : (i32, vector<8x128xf32>, f32) -> (i32, vector<8x128xf32>, f32) {
      %c50_i32 = arith.constant 50 : i32
      %9 = arith.cmpi slt, %arg4, %c50_i32 : i32
      %cst_3 = arith.constant 9.99999993E-9 : f32
      %10 = arith.cmpf oge, %arg6, %cst_3 : f32
      %11 = arith.andi %9, %10 : i1
      scf.condition(%11) %arg4, %arg5, %arg6 : i32, vector<8x128xf32>, f32
    } do {
    ^bb0(%arg4: i32, %arg5: vector<8x128xf32>, %arg6: f32):
      %c0_3 = arith.constant 0 : index
      %c0_4 = arith.constant 0 : index
      %9 = vector.load %arg2[%c0_3, %c0_4] : memref<128x128xf32, #tpu.memory_space<vmem>>, vector<128x128xf32>
      %cst_5 = arith.constant dense<0.000000e+00> : vector<8x128xf32>
      %10 = tpu.matmul %arg5, %9, %cst_5 {dimension_numbers = #tpu.dot_dimension_numbers<[1], [0], [0], [1], [0, 0, 1, 1], [], []>} : vector<8x128xf32>, vector<128x128xf32>, vector<8x128xf32> -> vector<8x128xf32>
      %11 = arith.addf %10, %0 : vector<8x128xf32>
      %12 = math.tanh %11 : vector<8x128xf32>
      %c0_6 = arith.constant 0 : index
      %c0_7 = arith.constant 0 : index
      %13 = vector.load %arg2[%c0_6, %c0_7] : memref<128x128xf32, #tpu.memory_space<vmem>>, vector<128x128xf32>
      %cst_8 = arith.constant dense<0.000000e+00> : vector<8x128xf32>
      %14 = tpu.matmul %12, %13, %cst_8 {dimension_numbers = #tpu.dot_dimension_numbers<[1], [0], [0], [1], [0, 0, 1, 1], [], []>} : vector<8x128xf32>, vector<128x128xf32>, vector<8x128xf32> -> vector<8x128xf32>
      %15 = arith.addf %14, %0 : vector<8x128xf32>
      %16 = math.tanh %15 : vector<8x128xf32>
      %17 = arith.subf %12, %16 : vector<8x128xf32>
      %c2_i32 = arith.constant 2 : i32
      %18 = arith.addi %arg4, %c2_i32 : i32
      %19 = arith.mulf %17, %17 : vector<8x128xf32>
      %20 = vector.shape_cast %19 : vector<8x128xf32> to vector<1x8x128xf32>
      %cst_9 = arith.constant dense<0.000000e+00> : vector<1xf32>
      %21 = vector.multi_reduction <add>, %20, %cst_9 [1, 2] : vector<1x8x128xf32> to vector<1xf32>
      %22 = vector.shape_cast %21 : vector<1xf32> to vector<1x1x1xf32>
      %23 = vector.extract %22[0, 0, 0] : f32 from vector<1x1x1xf32>
      scf.yield %18, %16, %23 : i32, vector<8x128xf32>, f32
    }
    %c0_1 = arith.constant 0 : index
    %c0_2 = arith.constant 0 : index
    %8 = vector.load %arg3[%c0_1, %c0_2] : memref<8x128xf32, #tpu.memory_space<vmem>>, vector<8x128xf32>
    tpu.vector_store %arg3[%c0_1, %c0_2], %7#1 {strides = array<i32>} : memref<8x128xf32, #tpu.memory_space<vmem>>, vector<8x128xf32>,
    return
  }
  func.func @transform_0(%arg0: i32) -> (i32, i32) {
    %c0_i32 = arith.constant 0 : i32
    %c0_i32_0 = arith.constant 0 : i32
    return %arg0, %c0_i32 : i32, i32
  }
  func.func @transform_1(%arg0: i32) -> (i32, i32) {
    %c0_i32 = arith.constant 0 : i32
    %c0_i32_0 = arith.constant 0 : i32
    %c0_i32_1 = arith.constant 0 : i32
    return %c0_i32, %c0_i32_0 : i32, i32
  }
  func.func @transform_2(%arg0: i32) -> (i32, i32) {
    %c0_i32 = arith.constant 0 : i32
    %c0_i32_0 = arith.constant 0 : i32
    return %arg0, %c0_i32 : i32, i32
  }
}

module attributes {stable_mosaic.version = 11 : i64} {
  func.func @_fixed_point_kernel(%arg0: i32, %arg1: memref<8x128xf32, #tpu.memory_space<vmem>>, %arg2: memref<128x128xf32, #tpu.memory_space<vmem>>, %arg3: memref<8x128xf32, #tpu.memory_space<vmem>>) attributes {dimension_semantics = [#tpu.dimension_semantics<parallel>], iteration_bounds = array<i64: 1>, scalar_prefetch = 0 : i64, scratch_operands = 0 : i64, tpu.core_type = #tpu.core_type<tc>, window_params = [{transform_indices = @transform_0, window_bounds = array<i64: 8, 128>}, {pipeline_mode = #tpu.pipeline_mode<synchronous>, transform_indices = @transform_1, window_bounds = array<i64: 128, 128>}, {transform_indices = @transform_2, window_bounds = array<i64: 8, 128>}]} {
    %c0 = arith.constant 0 : index
    %c0_0 = arith.constant 0 : index
    %0 = vector.load %arg1[%c0, %c0_0] : memref<8x128xf32, #tpu.memory_space<vmem>>, vector<8x128xf32>
    %1 = math.tanh %0 : vector<8x128xf32>
    %2 = arith.mulf %1, %1 : vector<8x128xf32>
    %3 = vector.shape_cast %2 : vector<8x128xf32> to vector<1x8x128xf32>
    %cst = arith.constant dense<0.000000e+00> : vector<1xf32>
    %4 = vector.multi_reduction <add>, %3, %cst [1, 2] : vector<1x8x128xf32> to vector<1xf32>
    %5 = vector.shape_cast %4 : vector<1xf32> to vector<1x1x1xf32>
    %6 = vector.extract %5[0, 0, 0] : f32 from vector<1x1x1xf32>
    %c1_i32 = arith.constant 1 : i32
    %7:3 = scf.while (%arg4 = %c1_i32, %arg5 = %1, %arg6 = %6) : (i32, vector<8x128xf32>, f32) -> (i32, vector<8x128xf32>, f32) {
      %c50_i32 = arith.constant 50 : i32
      %9 = arith.cmpi slt, %arg4, %c50_i32 : i32
      %cst_3 = arith.constant 9.99999993E-9 : f32
      %10 = arith.cmpf oge, %arg6, %cst_3 : f32
      %11 = arith.andi %9, %10 : i1
      scf.condition(%11) %arg4, %arg5, %arg6 : i32, vector<8x128xf32>, f32
    } do {
    ^bb0(%arg4: i32, %arg5: vector<8x128xf32>, %arg6: f32):
      %c0_3 = arith.constant 0 : index
      %c0_4 = arith.constant 0 : index
      %9 = vector.load %arg2[%c0_3, %c0_4] : memref<128x128xf32, #tpu.memory_space<vmem>>, vector<128x128xf32>
      %cst_5 = arith.constant dense<0.000000e+00> : vector<8x128xf32>
      %10 = tpu.matmul %arg5, %9, %cst_5 {dimension_numbers = #tpu.dot_dimension_numbers<[1], [0], [0], [1], [0, 0, 1, 1], [], []>} : vector<8x128xf32>, vector<128x128xf32>, vector<8x128xf32> -> vector<8x128xf32>
      %11 = arith.addf %10, %0 : vector<8x128xf32>
      %12 = math.tanh %11 : vector<8x128xf32>
      %c0_6 = arith.constant 0 : index
      %c0_7 = arith.constant 0 : index
      %13 = vector.load %arg2[%c0_6, %c0_7] : memref<128x128xf32, #tpu.memory_space<vmem>>, vector<128x128xf32>
      %cst_8 = arith.constant dense<0.000000e+00> : vector<8x128xf32>
      %14 = tpu.matmul %12, %13, %cst_8 {dimension_numbers = #tpu.dot_dimension_numbers<[1], [0], [0], [1], [0, 0, 1, 1], [], []>} : vector<8x128xf32>, vector<128x128xf32>, vector<8x128xf32> -> vector<8x128xf32>
      %15 = arith.addf %14, %0 : vector<8x128xf32>
      %16 = math.tanh %15 : vector<8x128xf32>
      %17 = arith.subf %12, %16 : vector<8x128xf32>
      %c2_i32 = arith.constant 2 : i32
      %18 = arith.addi %arg4, %c2_i32 : i32
      %19 = arith.mulf %17, %17 : vector<8x128xf32>
      %20 = vector.shape_cast %19 : vector<8x128xf32> to vector<1x8x128xf32>
      %cst_9 = arith.constant dense<0.000000e+00> : vector<1xf32>
      %21 = vector.multi_reduction <add>, %20, %cst_9 [1, 2] : vector<1x8x128xf32> to vector<1xf32>
      %22 = vector.shape_cast %21 : vector<1xf32> to vector<1x1x1xf32>
      %23 = vector.extract %22[0, 0, 0] : f32 from vector<1x1x1xf32>
      scf.yield %18, %16, %23 : i32, vector<8x128xf32>, f32
    }
    %c0_1 = arith.constant 0 : index
    %c0_2 = arith.constant 0 : index
    %8 = vector.load %arg3[%c0_1, %c0_2] : memref<8x128xf32, #tpu.memory_space<vmem>>, vector<8x128xf32>
    tpu.vector_store %arg3[%c0_1, %c0_2], %7#1 {strides = array<i32>} : memref<8x128xf32, #tpu.memory_space<vmem>>, vector<8x128xf32>,
    return
  }
  func.func @transform_0(%arg0: i32) -> (i32, i32) {
    %c0_i32 = arith.constant 0 : i32
    %c0_i32_0 = arith.constant 0 : i32
    return %arg0, %c0_i32 : i32, i32
  }
  func.func @transform_1(%arg0: i32) -> (i32, i32) {
    %c0_i32 = arith.constant 0 : i32
    %c0_i32_0 = arith.constant 0 : i32
    %c0_i32_1 = arith.constant 0 : i32
    return %c0_i32, %c0_i32_0 : i32, i32
  }
  func.func @transform_2(%arg0: i32) -> (i32, i32) {
    %c0_i32 = arith.constant 0 : i32
    %c0_i32_0 = arith.constant 0 : i32
    return %arg0, %c0_i32 : i32, i32
  }
}

</mosaic_0001>

<llo_original>
// kernel: tpu_custom_call.1
$region0: #{tpu_custom_call.1}
  #allocation0 [shape = 'u32[]', space=smem, size = 0x4, offset = 0x4, fixed_abs, tag = 'smem constant byte address 0x4 - core index']
  #allocation1 [shape = 'u32[144,128]{1,0:T(1,128)}', space=vmem, size = 0x12000, scoped, tag = 'internal scratch']
  %s0 = inlined_call_operand.hbm [shape: f32[8,128], index: 0, kind: input, shape index: {}]
  %s1 = inlined_call_operand.hbm [shape: f32[128,128], index: 1, kind: input, shape index: {}]
  %s2 = inlined_call_operand.hbm [shape: f32[8,128], index: 2, kind: output, shape index: {}]
  %s3 = sld [smem:[#allocation0]]
  $region33: #{tpu_custom_call.1} parent=0
    _
  %s5 = ssub.s32 1, %s3
  %s6 = scalar_select 0, %s5, %s3
  $region1: #{tpu_custom_call.1} parent=0
    #allocation2 [shape = 'u8[4096]{0}', space=vmem, size = 0x1000, scoped, tag = 'input window, operand 0, single buffered']
    #allocation3 [shape = 's32[1]{0}', space=sflag, size = 0x4, scoped, tag = 'scoped memory for tpu_custom_call.1']
    #allocation4 [shape = 's32[1]{0}', space=sflag, size = 0x4, scoped, tag = 'scoped memory for tpu_custom_call.1']
    #allocation5 [shape = 'u8[65536]{0}', space=vmem, size = 0x10000, scoped, tag = 'input window, operand 1, single buffered']
    #allocation6 [shape = 's32[1]{0}', space=sflag, size = 0x4, scoped, tag = 'scoped memory for tpu_custom_call.1']
    #allocation7 [shape = 'u8[4096]{0}', space=vmem, size = 0x1000, scoped, tag = 'output window, operand 0, single buffered']
    %7 = vsyncpa [#allocation3], 0
    %8 = vsyncpa [#allocation6], 0
    %9 = vsyncpa [#allocation4], 0
    // Predicated region
    $region2: #{tpu_custom_call.1} parent=1 // pred_check
      _
    $region3: #{tpu_custom_call.1} parent=1 // pred_check_branch
      %11 = sbr.rel (0) target = $region5
    $region4: #{tpu_custom_call.1} parent=1 // pred_region
      %s13 = ssub.s32 128, 128
      %14 = vsyncadd [#allocation3], %s13
      %s16 = sshll.u32 [#allocation2], 4
      %s17 = int_to_ptr.vmem [resolvable:$true] %s16
      %19 = dma.hbm_to_vmem [thread:$0]  %s0, 128, %s17, [#allocation3]
    $region5: #{tpu_custom_call.1} parent=1 // pred_fallthru
      _
    // Predicated region
    $region6: #{tpu_custom_call.1} parent=1 // pred_check
      _
    $region7: #{tpu_custom_call.1} parent=1 // pred_check_branch
      %21 = sbr.rel (0) target = $region9
    $region8: #{tpu_custom_call.1} parent=1 // pred_region
      %s23 = ssub.s32 2048, 2048
      %24 = vsyncadd [#allocation6], %s23
      %s25 = sshll.u32 [#allocation5], 4
      %s26 = int_to_ptr.vmem [resolvable:$true] %s25
      %31 = dma.hbm_to_vmem [thread:$0]  %s1, 2048, %s26, [#allocation6], 128, 128, 8
    $region9: #{tpu_custom_call.1} parent=1 // pred_fallthru
      _
    // Predicated region
    $region10: #{tpu_custom_call.1} parent=1 // pred_check
      _
    $region11: #{tpu_custom_call.1} parent=1 // pred_check_branch
      %33 = sbr.rel (0) target = $region13
    $region12: #{tpu_custom_call.1} parent=1 // pred_region
      %34 = dma.done [#allocation3], 128
    $region13: #{tpu_custom_call.1} parent=1 // pred_fallthru
      _
    // Predicated region
    $region14: #{tpu_custom_call.1} parent=1 // pred_check
      _
    $region15: #{tpu_custom_call.1} parent=1 // pred_check_branch
      %36 = sbr.rel (0) target = $region17
    $region16: #{tpu_custom_call.1} parent=1 // pred_region
      %37 = dma.done [#allocation6], 2048
    $region17: #{tpu_custom_call.1} parent=1 // pred_fallthru
      _
    %v38 = vld [vmem:[#allocation2] sm:$0xff]
    %v39 = vtanh.pop %v38
    %v40 = vmul.f32 %v39, %v39
    %41 = vadd.xlane.f32.xlu0 %v40
    %v42 = vpop.xlane.xlu0 %41
    %v43 = vrot.slane %v42, 4
    %v44 = vadd.f32 %v42, %v43
    %v45 = vrot.slane %v44, 2
    %v46 = vadd.f32 %v44, %v45
    %v47 = vrot.slane %v46, 1
    %v48 = vadd.f32 %v46, %v47
    %s49 = vtos %v48
    // While loop
    $region18: #{tpu_custom_call.1} parent=1 // loop_pre_header
      _
    $region19: #{tpu_custom_call.1} parent=1 // loop_header
      %s51 = sphi 1, %s219
      %v52 = vphi %v39, %v217
      %s53 = sphi %s49, %s229
      %p54 = scmp.lt.s32.totalorder %s51, 50
      %p55 = scmp.ge.f32.partialorder %s53, 1e-08
      %p56 = pnand %p54, %p55
      %p57 = pneg %p56
    $region20: #{tpu_custom_call.1} parent=1 // loop_header_branch
      %59 = sbr.rel (%p56) target = $region24
    $region21: #{tpu_custom_call.1} parent=1 // loop_body
      %v60 = vld [vmem:[#allocation5] sm:$0xff]
      %v61 = vld [vmem:[#allocation5 + $0x8] sm:$0xff]
      %v62 = vld [vmem:[#allocation5 + $0x10] sm:$0xff]
      %v63 = vld [vmem:[#allocation5 + $0x18] sm:$0xff]
      %v64 = vld [vmem:[#allocation5 + $0x20] sm:$0xff]
      %v65 = vld [vmem:[#allocation5 + $0x28] sm:$0xff]
      %v66 = vld [vmem:[#allocation5 + $0x30] sm:$0xff]
      %v67 = vld [vmem:[#allocation5 + $0x38] sm:$0xff]
      %v68 = vld [vmem:[#allocation5 + $0x40] sm:$0xff]
      %v69 = vld [vmem:[#allocation5 + $0x48] sm:$0xff]
      %v70 = vld [vmem:[#allocation5 + $0x50] sm:$0xff]
      %v71 = vld [vmem:[#allocation5 + $0x58] sm:$0xff]
      %v72 = vld [vmem:[#allocation5 + $0x60] sm:$0xff]
      %v73 = vld [vmem:[#allocation5 + $0x68] sm:$0xff]
      %v74 = vld [vmem:[#allocation5 + $0x70] sm:$0xff]
      %v75 = vld [vmem:[#allocation5 + $0x78] sm:$0xff]
      %76 = vmatprep.subr.mxu0 0.0
      %77 = vmatpush1.msra.mxu0 %v75
      %78 = vmatprep.subr.mxu0 0.0
      %79 = vmatpush1.msra.mxu0 %v74
      %80 = vmatprep.subr.mxu0 0.0
      %81 = vmatpush1.msra.mxu0 %v73
      %82 = vmatprep.subr.mxu0 0.0
      %83 = vmatpush1.msra.mxu0 %v72
      %84 = vmatprep.subr.mxu0 0.0
      %85 = vmatpush1.msra.mxu0 %v71
      %86 = vmatprep.subr.mxu0 0.0
      %87 = vmatpush1.msra.mxu0 %v70
      %88 = vmatprep.subr.mxu0 0.0
      %89 = vmatpush1.msra.mxu0 %v69
      %90 = vmatprep.subr.mxu0 0.0
      %91 = vmatpush1.msra.mxu0 %v68
      %92 = vmatprep.subr.mxu0 0.0
      %93 = vmatpush1.msra.mxu0 %v67
      %94 = vmatprep.subr.mxu0 0.0
      %95 = vmatpush1.msra.mxu0 %v66
      %96 = vmatprep.subr.mxu0 0.0
      %97 = vmatpush1.msra.mxu0 %v65
      %98 = vmatprep.subr.mxu0 0.0
      %99 = vmatpush1.msra.mxu0 %v64
      %100 = vmatprep.subr.mxu0 0.0
      %101 = vmatpush1.msra.mxu0 %v63
      %102 = vmatprep.subr.mxu0 0.0
      %103 = vmatpush1.msra.mxu0 %v62
      %104 = vmatprep.subr.mxu0 0.0
      %105 = vmatpush1.msra.mxu0 %v61
      %106 = vmatprep.subr.mxu0 0.0
      %107 = vmatpush1.msra.mxu0 %v60
      %108 = vmatprep.subr.mxu0 0.0
      %109 = vmatpush2.msra.mxu0 0.0
      %110 = vmatprep.subr.mxu0 0.0
      %111 = vmatpush2.msra.mxu0 0.0
      %112 = vmatprep.subr.mxu0 0.0
      %113 = vmatpush2.msra.mxu0 0.0
      %114 = vmatprep.subr.mxu0 0.0
      %115 = vmatpush2.msra.mxu0 0.0
      %116 = vmatprep.subr.mxu0 0.0
      %117 = vmatpush2.msra.mxu0 0.0
      %118 = vmatprep.subr.mxu0 0.0
      %119 = vmatpush2.msra.mxu0 0.0
      %120 = vmatprep.subr.mxu0 0.0
      %121 = vmatpush2.msra.mxu0 0.0
      %122 = vmatprep.subr.mxu0 0.0
      %123 = vmatpush2.msra.mxu0 0.0
      %124 = vmatprep.subr.mxu0 0.0
      %125 = vmatpush2.msra.mxu0 0.0
      %126 = vmatprep.subr.mxu0 0.0
      %127 = vmatpush2.msra.mxu0 0.0
      %128 = vmatprep.subr.mxu0 0.0
      %129 = vmatpush2.msra.mxu0 0.0
      %130 = vmatprep.subr.mxu0 0.0
      %131 = vmatpush2.msra.mxu0 0.0
      %132 = vmatprep.subr.mxu0 0.0
      %133 = vmatpush2.msra.mxu0 0.0
      %134 = vmatprep.subr.mxu0 0.0
      %135 = vmatpush2.msra.mxu0 0.0
      %136 = vmatprep.subr.mxu0 0.0
      %137 = vmatpush2.msra.mxu0 0.0
      %138 = vmatprep.subr.mxu0 0.0
      %139 = vmatpush2.msra.mxu0 0.0
      %140 = vmatprep.mubr.f32.mxu0 0.0
      %141 = vmatmul.mubr.f32.gmra.mxu0 %v52
      %v142 = vpop.f32.mrf.mxu0
      %v143 = vadd.f32 %v38, %v142
      %v144 = vpop.f32.mrf.mxu0
      %145 = vdwg.mxu0
      %v146 = vtanh.pop %v143
      %147 = vmatprep.subr.mxu0 0.0
      %148 = vmatpush1.msra.mxu0 %v75
      %149 = vmatprep.subr.mxu0 0.0
      %150 = vmatpush1.msra.mxu0 %v74
      %151 = vmatprep.subr.mxu0 0.0
      %152 = vmatpush1.msra.mxu0 %v73
      %153 = vmatprep.subr.mxu0 0.0
      %154 = vmatpush1.msra.mxu0 %v72
      %155 = vmatprep.subr.mxu0 0.0
      %156 = vmatpush1.msra.mxu0 %v71
      %157 = vmatprep.subr.mxu0 0.0
      %158 = vmatpush1.msra.mxu0 %v70
      %159 = vmatprep.subr.mxu0 0.0
      %160 = vmatpush1.msra.mxu0 %v69
      %161 = vmatprep.subr.mxu0 0.0
      %162 = vmatpush1.msra.mxu0 %v68
      %163 = vmatprep.subr.mxu0 0.0
      %164 = vmatpush1.msra.mxu0 %v67
      %165 = vmatprep.subr.mxu0 0.0
      %166 = vmatpush1.msra.mxu0 %v66
      %167 = vmatprep.subr.mxu0 0.0
      %168 = vmatpush1.msra.mxu0 %v65
      %169 = vmatprep.subr.mxu0 0.0
      %170 = vmatpush1.msra.mxu0 %v64
      %171 = vmatprep.subr.mxu0 0.0
      %172 = vmatpush1.msra.mxu0 %v63
      %173 = vmatprep.subr.mxu0 0.0
      %174 = vmatpush1.msra.mxu0 %v62
      %175 = vmatprep.subr.mxu0 0.0
      %176 = vmatpush1.msra.mxu0 %v61
      %177 = vmatprep.subr.mxu0 0.0
      %178 = vmatpush1.msra.mxu0 %v60
      %179 = vmatprep.subr.mxu0 0.0
      %180 = vmatpush2.msra.mxu0 0.0
      %181 = vmatprep.subr.mxu0 0.0
      %182 = vmatpush2.msra.mxu0 0.0
      %183 = vmatprep.subr.mxu0 0.0
      %184 = vmatpush2.msra.mxu0 0.0
      %185 = vmatprep.subr.mxu0 0.0
      %186 = vmatpush2.msra.mxu0 0.0
      %187 = vmatprep.subr.mxu0 0.0
      %188 = vmatpush2.msra.mxu0 0.0
      %189 = vmatprep.subr.mxu0 0.0
      %190 = vmatpush2.msra.mxu0 0.0
      %191 = vmatprep.subr.mxu0 0.0
      %192 = vmatpush2.msra.mxu0 0.0
      %193 = vmatprep.subr.mxu0 0.0
      %194 = vmatpush2.msra.mxu0 0.0
      %195 = vmatprep.subr.mxu0 0.0
      %196 = vmatpush2.msra.mxu0 0.0
      %197 = vmatprep.subr.mxu0 0.0
      %198 = vmatpush2.msra.mxu0 0.0
      %199 = vmatprep.subr.mxu0 0.0
      %200 = vmatpush2.msra.mxu0 0.0
      %201 = vmatprep.subr.mxu0 0.0
      %202 = vmatpush2.msra.mxu0 0.0
      %203 = vmatprep.subr.mxu0 0.0
      %204 = vmatpush2.msra.mxu0 0.0
      %205 = vmatprep.subr.mxu0 0.0
      %206 = vmatpush2.msra.mxu0 0.0
      %207 = vmatprep.subr.mxu0 0.0
      %208 = vmatpush2.msra.mxu0 0.0
      %209 = vmatprep.subr.mxu0 0.0
      %210 = vmatpush2.msra.mxu0 0.0
      %211 = vmatprep.mubr.f32.mxu0 0.0
      %212 = vmatmul.mubr.f32.gmra.mxu0 %v146
      %v213 = vpop.f32.mrf.mxu0
      %v214 = vadd.f32 %v38, %v213
      %v215 = vpop.f32.mrf.mxu0
      %216 = vdwg.mxu0
      %v217 = vtanh.pop %v214
      %v218 = vsub.f32 %v146, %v217
      %s219 = sadd.s32 %s51, 2
      %v220 = vmul.f32 %v218, %v218
      %221 = vadd.xlane.f32.xlu0 %v220
      %v222 = vpop.xlane.xlu0 %221
      %v223 = vrot.slane %v222, 4
      %v224 = vadd.f32 %v222, %v223
      %v225 = vrot.slane %v224, 2
      %v226 = vadd.f32 %v224, %v225
      %v227 = vrot.slane %v226, 1
      %v228 = vadd.f32 %v226, %v227
      %s229 = vtos %v228
    $region22: #{tpu_custom_call.1} parent=1 // loop_footer
      _
    $region23: #{tpu_custom_call.1} parent=1 // loop_footer_branch
      %50 = sbr.rel target = $region19
    $region24: #{tpu_custom_call.1} parent=1 // loop_exit
      _
    %230 = vst [vmem:[#allocation7] sm:$0xff] %v52
    // Predicated region
    $region25: #{tpu_custom_call.1} parent=1 // pred_check
      _
    $region26: #{tpu_custom_call.1} parent=1 // pred_check_branch
      %232 = sbr.rel (0) target = $region28
    $region27: #{tpu_custom_call.1} parent=1 // pred_region
      %s234 = ssub.s32 128, 128
      %235 = vsyncadd [#allocation4], %s234
      %s237 = sshll.u32 [#allocation7], 4
      %s238 = int_to_ptr.vmem [resolvable:$true] %s237
      %240 = dma.vmem_to_hbm [thread:$0]  %s238, 128, %s2, [#allocation4]
    $region28: #{tpu_custom_call.1} parent=1 // pred_fallthru
      _
    // Predicated region
    $region29: #{tpu_custom_call.1} parent=1 // pred_check
      _
    $region30: #{tpu_custom_call.1} parent=1 // pred_check_branch
      %242 = sbr.rel (0) target = $region32
    $region31: #{tpu_custom_call.1} parent=1 // pred_region
      %243 = dma.done [#allocation4], 128
    $region32: #{tpu_custom_call.1} parent=1 // pred_fallthru
      _
    %244 = vsyncpa [#allocation3], 1
    %245 = vsyncpa [#allocation6], 1
    %246 = vsyncpa [#allocation4], 1

// kernel: tpu_custom_call.1
$region0: #{tpu_custom_call.1}
  #allocation0 [shape = 'u32[]', space=smem, size = 0x4, offset = 0x4, fixed_abs, tag = 'smem constant byte address 0x4 - core index']
  #allocation1 [shape = 'u32[144,128]{1,0:T(1,128)}', space=vmem, size = 0x12000, scoped, tag = 'internal scratch']
  %s0 = inlined_call_operand.hbm [shape: f32[8,128], index: 0, kind: input, shape index: {}]
  %s1 = inlined_call_operand.hbm [shape: f32[128,128], index: 1, kind: input, shape index: {}]
  %s2 = inlined_call_operand.hbm [shape: f32[8,128], index: 2, kind: output, shape index: {}]
  %s3 = sld [smem:[#allocation0]]
  $region33: #{tpu_custom_call.1} parent=0
    _
  %s5 = ssub.s32 1, %s3
  %s6 = scalar_select 0, %s5, %s3
  $region1: #{tpu_custom_call.1} parent=0
    #allocation2 [shape = 'u8[4096]{0}', space=vmem, size = 0x1000, scoped, tag = 'input window, operand 0, single buffered']
    #allocation3 [shape = 's32[1]{0}', space=sflag, size = 0x4, scoped, tag = 'scoped memory for tpu_custom_call.1']
    #allocation4 [shape = 's32[1]{0}', space=sflag, size = 0x4, scoped, tag = 'scoped memory for tpu_custom_call.1']
    #allocation5 [shape = 'u8[65536]{0}', space=vmem, size = 0x10000, scoped, tag = 'input window, operand 1, single buffered']
    #allocation6 [shape = 's32[1]{0}', space=sflag, size = 0x4, scoped, tag = 'scoped memory for tpu_custom_call.1']
    #allocation7 [shape = 'u8[4096]{0}', space=vmem, size = 0x1000, scoped, tag = 'output window, operand 0, single buffered']
    %7 = vsyncpa [#allocation3], 0
    %8 = vsyncpa [#allocation6], 0
    %9 = vsyncpa [#allocation4], 0
    // Predicated region
    $region2: #{tpu_custom_call.1} parent=1 // pred_check
      _
    $region3: #{tpu_custom_call.1} parent=1 // pred_check_branch
      %11 = sbr.rel (0) target = $region5
    $region4: #{tpu_custom_call.1} parent=1 // pred_region
      %s13 = ssub.s32 128, 128
      %14 = vsyncadd [#allocation3], %s13
      %s16 = sshll.u32 [#allocation2], 4
      %s17 = int_to_ptr.vmem [resolvable:$true] %s16
      %19 = dma.hbm_to_vmem [thread:$0]  %s0, 128, %s17, [#allocation3]
    $region5: #{tpu_custom_call.1} parent=1 // pred_fallthru
      _
    // Predicated region
    $region6: #{tpu_custom_call.1} parent=1 // pred_check
      _
    $region7: #{tpu_custom_call.1} parent=1 // pred_check_branch
      %21 = sbr.rel (0) target = $region9
    $region8: #{tpu_custom_call.1} parent=1 // pred_region
      %s23 = ssub.s32 2048, 2048
      %24 = vsyncadd [#allocation6], %s23
      %s25 = sshll.u32 [#allocation5], 4
      %s26 = int_to_ptr.vmem [resolvable:$true] %s25
      %31 = dma.hbm_to_vmem [thread:$0]  %s1, 2048, %s26, [#allocation6], 128, 128, 8
    $region9: #{tpu_custom_call.1} parent=1 // pred_fallthru
      _
    // Predicated region
    $region10: #{tpu_custom_call.1} parent=1 // pred_check
      _
    $region11: #{tpu_custom_call.1} parent=1 // pred_check_branch
      %33 = sbr.rel (0) target = $region13
    $region12: #{tpu_custom_call.1} parent=1 // pred_region
      %34 = dma.done [#allocation3], 128
    $region13: #{tpu_custom_call.1} parent=1 // pred_fallthru
      _
    // Predicated region
    $region14: #{tpu_custom_call.1} parent=1 // pred_check
      _
    $region15: #{tpu_custom_call.1} parent=1 // pred_check_branch
      %36 = sbr.rel (0) target = $region17
    $region16: #{tpu_custom_call.1} parent=1 // pred_region
      %37 = dma.done [#allocation6], 2048
    $region17: #{tpu_custom_call.1} parent=1 // pred_fallthru
      _
    %v38 = vld [vmem:[#allocation2] sm:$0xff]
    %v39 = vtanh.pop %v38
    %v40 = vmul.f32 %v39, %v39
    %41 = vadd.xlane.f32.xlu0 %v40
    %v42 = vpop.xlane.xlu0 %41
    %v43 = vrot.slane %v42, 4
    %v44 = vadd.f32 %v42, %v43
    %v45 = vrot.slane %v44, 2
    %v46 = vadd.f32 %v44, %v45
    %v47 = vrot.slane %v46, 1
    %v48 = vadd.f32 %v46, %v47
    %s49 = vtos %v48
    // While loop
    $region18: #{tpu_custom_call.1} parent=1 // loop_pre_header
      _
    $region19: #{tpu_custom_call.1} parent=1 // loop_header
      %s51 = sphi 1, %s219
      %v52 = vphi %v39, %v217
      %s53 = sphi %s49, %s229
      %p54 = scmp.lt.s32.totalorder %s51, 50
      %p55 = scmp.ge.f32.partialorder %s53, 1e-08
      %p56 = pnand %p54, %p55
      %p57 = pneg %p56
    $region20: #{tpu_custom_call.1} parent=1 // loop_header_branch
      %59 = sbr.rel (%p56) target = $region24
    $region21: #{tpu_custom_call.1} parent=1 // loop_body
      %v60 = vld [vmem:[#allocation5] sm:$0xff]
      %v61 = vld [vmem:[#allocation5 + $0x8] sm:$0xff]
      %v62 = vld [vmem:[#allocation5 + $0x10] sm:$0xff]
      %v63 = vld [vmem:[#allocation5 + $0x18] sm:$0xff]
      %v64 = vld [vmem:[#allocation5 + $0x20] sm:$0xff]
      %v65 = vld [vmem:[#allocation5 + $0x28] sm:$0xff]
      %v66 = vld [vmem:[#allocation5 + $0x30] sm:$0xff]
      %v67 = vld [vmem:[#allocation5 + $0x38] sm:$0xff]
      %v68 = vld [vmem:[#allocation5 + $0x40] sm:$0xff]
      %v69 = vld [vmem:[#allocation5 + $0x48] sm:$0xff]
      %v70 = vld [vmem:[#allocation5 + $0x50] sm:$0xff]
      %v71 = vld [vmem:[#allocation5 + $0x58] sm:$0xff]
      %v72 = vld [vmem:[#allocation5 + $0x60] sm:$0xff]
      %v73 = vld [vmem:[#allocation5 + $0x68] sm:$0xff]
      %v74 = vld [vmem:[#allocation5 + $0x70] sm:$0xff]
      %v75 = vld [vmem:[#allocation5 + $0x78] sm:$0xff]
      %76 = vmatprep.subr.mxu0 0.0
      %77 = vmatpush1.msra.mxu0 %v75
      %78 = vmatprep.subr.mxu0 0.0
      %79 = vmatpush1.msra.mxu0 %v74
      %80 = vmatprep.subr.mxu0 0.0
      %81 = vmatpush1.msra.mxu0 %v73
      %82 = vmatprep.subr.mxu0 0.0
      %83 = vmatpush1.msra.mxu0 %v72
      %84 = vmatprep.subr.mxu0 0.0
      %85 = vmatpush1.msra.mxu0 %v71
      %86 = vmatprep.subr.mxu0 0.0
      %87 = vmatpush1.msra.mxu0 %v70
      %88 = vmatprep.subr.mxu0 0.0
      %89 = vmatpush1.msra.mxu0 %v69
      %90 = vmatprep.subr.mxu0 0.0
      %91 = vmatpush1.msra.mxu0 %v68
      %92 = vmatprep.subr.mxu0 0.0
      %93 = vmatpush1.msra.mxu0 %v67
      %94 = vmatprep.subr.mxu0 0.0
      %95 = vmatpush1.msra.mxu0 %v66
      %96 = vmatprep.subr.mxu0 0.0
      %97 = vmatpush1.msra.mxu0 %v65
      %98 = vmatprep.subr.mxu0 0.0
      %99 = vmatpush1.msra.mxu0 %v64
      %100 = vmatprep.subr.mxu0 0.0
      %101 = vmatpush1.msra.mxu0 %v63
      %102 = vmatprep.subr.mxu0 0.0
      %103 = vmatpush1.msra.mxu0 %v62
      %104 = vmatprep.subr.mxu0 0.0
      %105 = vmatpush1.msra.mxu0 %v61
      %106 = vmatprep.subr.mxu0 0.0
      %107 = vmatpush1.msra.mxu0 %v60
      %108 = vmatprep.subr.mxu0 0.0
      %109 = vmatpush2.msra.mxu0 0.0
      %110 = vmatprep.subr.mxu0 0.0
      %111 = vmatpush2.msra.mxu0 0.0
      %112 = vmatprep.subr.mxu0 0.0
      %113 = vmatpush2.msra.mxu0 0.0
      %114 = vmatprep.subr.mxu0 0.0
      %115 = vmatpush2.msra.mxu0 0.0
      %116 = vmatprep.subr.mxu0 0.0
      %117 = vmatpush2.msra.mxu0 0.0
      %118 = vmatprep.subr.mxu0 0.0
      %119 = vmatpush2.msra.mxu0 0.0
      %120 = vmatprep.subr.mxu0 0.0
      %121 = vmatpush2.msra.mxu0 0.0
      %122 = vmatprep.subr.mxu0 0.0
      %123 = vmatpush2.msra.mxu0 0.0
      %124 = vmatprep.subr.mxu0 0.0
      %125 = vmatpush2.msra.mxu0 0.0
      %126 = vmatprep.subr.mxu0 0.0
      %127 = vmatpush2.msra.mxu0 0.0
      %128 = vmatprep.subr.mxu0 0.0
      %129 = vmatpush2.msra.mxu0 0.0
      %130 = vmatprep.subr.mxu0 0.0
      %131 = vmatpush2.msra.mxu0 0.0
      %132 = vmatprep.subr.mxu0 0.0
      %133 = vmatpush2.msra.mxu0 0.0
      %134 = vmatprep.subr.mxu0 0.0
      %135 = vmatpush2.msra.mxu0 0.0
      %136 = vmatprep.subr.mxu0 0.0
      %137 = vmatpush2.msra.mxu0 0.0
      %138 = vmatprep.subr.mxu0 0.0
      %139 = vmatpush2.msra.mxu0 0.0
      %140 = vmatprep.mubr.f32.mxu0 0.0
      %141 = vmatmul.mubr.f32.gmra.mxu0 %v52
      %v142 = vpop.f32.mrf.mxu0
      %v143 = vadd.f32 %v38, %v142
      %v144 = vpop.f32.mrf.mxu0
      %145 = vdwg.mxu0
      %v146 = vtanh.pop %v143
      %147 = vmatprep.subr.mxu0 0.0
      %148 = vmatpush1.msra.mxu0 %v75
      %149 = vmatprep.subr.mxu0 0.0
      %150 = vmatpush1.msra.mxu0 %v74
      %151 = vmatprep.subr.mxu0 0.0
      %152 = vmatpush1.msra.mxu0 %v73
      %153 = vmatprep.subr.mxu0 0.0
      %154 = vmatpush1.msra.mxu0 %v72
      %155 = vmatprep.subr.mxu0 0.0
      %156 = vmatpush1.msra.mxu0 %v71
      %157 = vmatprep.subr.mxu0 0.0
      %158 = vmatpush1.msra.mxu0 %v70
      %159 = vmatprep.subr.mxu0 0.0
      %160 = vmatpush1.msra.mxu0 %v69
      %161 = vmatprep.subr.mxu0 0.0
      %162 = vmatpush1.msra.mxu0 %v68
      %163 = vmatprep.subr.mxu0 0.0
      %164 = vmatpush1.msra.mxu0 %v67
      %165 = vmatprep.subr.mxu0 0.0
      %166 = vmatpush1.msra.mxu0 %v66
      %167 = vmatprep.subr.mxu0 0.0
      %168 = vmatpush1.msra.mxu0 %v65
      %169 = vmatprep.subr.mxu0 0.0
      %170 = vmatpush1.msra.mxu0 %v64
      %171 = vmatprep.subr.mxu0 0.0
      %172 = vmatpush1.msra.mxu0 %v63
      %173 = vmatprep.subr.mxu0 0.0
      %174 = vmatpush1.msra.mxu0 %v62
      %175 = vmatprep.subr.mxu0 0.0
      %176 = vmatpush1.msra.mxu0 %v61
      %177 = vmatprep.subr.mxu0 0.0
      %178 = vmatpush1.msra.mxu0 %v60
      %179 = vmatprep.subr.mxu0 0.0
      %180 = vmatpush2.msra.mxu0 0.0
      %181 = vmatprep.subr.mxu0 0.0
      %182 = vmatpush2.msra.mxu0 0.0
      %183 = vmatprep.subr.mxu0 0.0
      %184 = vmatpush2.msra.mxu0 0.0
      %185 = vmatprep.subr.mxu0 0.0
      %186 = vmatpush2.msra.mxu0 0.0
      %187 = vmatprep.subr.mxu0 0.0
      %188 = vmatpush2.msra.mxu0 0.0
      %189 = vmatprep.subr.mxu0 0.0
      %190 = vmatpush2.msra.mxu0 0.0
      %191 = vmatprep.subr.mxu0 0.0
      %192 = vmatpush2.msra.mxu0 0.0
      %193 = vmatprep.subr.mxu0 0.0
      %194 = vmatpush2.msra.mxu0 0.0
      %195 = vmatprep.subr.mxu0 0.0
      %196 = vmatpush2.msra.mxu0 0.0
      %197 = vmatprep.subr.mxu0 0.0
      %198 = vmatpush2.msra.mxu0 0.0
      %199 = vmatprep.subr.mxu0 0.0
      %200 = vmatpush2.msra.mxu0 0.0
      %201 = vmatprep.subr.mxu0 0.0
      %202 = vmatpush2.msra.mxu0 0.0
      %203 = vmatprep.subr.mxu0 0.0
      %204 = vmatpush2.msra.mxu0 0.0
      %205 = vmatprep.subr.mxu0 0.0
      %206 = vmatpush2.msra.mxu0 0.0
      %207 = vmatprep.subr.mxu0 0.0
      %208 = vmatpush2.msra.mxu0 0.0
      %209 = vmatprep.subr.mxu0 0.0
      %210 = vmatpush2.msra.mxu0 0.0
      %211 = vmatprep.mubr.f32.mxu0 0.0
      %212 = vmatmul.mubr.f32.gmra.mxu0 %v146
      %v213 = vpop.f32.mrf.mxu0
      %v214 = vadd.f32 %v38, %v213
      %v215 = vpop.f32.mrf.mxu0
      %216 = vdwg.mxu0
      %v217 = vtanh.pop %v214
      %v218 = vsub.f32 %v146, %v217
      %s219 = sadd.s32 %s51, 2
      %v220 = vmul.f32 %v218, %v218
      %221 = vadd.xlane.f32.xlu0 %v220
      %v222 = vpop.xlane.xlu0 %221
      %v223 = vrot.slane %v222, 4
      %v224 = vadd.f32 %v222, %v223
      %v225 = vrot.slane %v224, 2
      %v226 = vadd.f32 %v224, %v225
      %v227 = vrot.slane %v226, 1
      %v228 = vadd.f32 %v226, %v227
      %s229 = vtos %v228
    $region22: #{tpu_custom_call.1} parent=1 // loop_footer
      _
    $region23: #{tpu_custom_call.1} parent=1 // loop_footer_branch
      %50 = sbr.rel target = $region19
    $region24: #{tpu_custom_call.1} parent=1 // loop_exit
      _
    %230 = vst [vmem:[#allocation7] sm:$0xff] %v52
    // Predicated region
    $region25: #{tpu_custom_call.1} parent=1 // pred_check
      _
    $region26: #{tpu_custom_call.1} parent=1 // pred_check_branch
      %232 = sbr.rel (0) target = $region28
    $region27: #{tpu_custom_call.1} parent=1 // pred_region
      %s234 = ssub.s32 128, 128
      %235 = vsyncadd [#allocation4], %s234
      %s237 = sshll.u32 [#allocation7], 4
      %s238 = int_to_ptr.vmem [resolvable:$true] %s237
      %240 = dma.vmem_to_hbm [thread:$0]  %s238, 128, %s2, [#allocation4]
    $region28: #{tpu_custom_call.1} parent=1 // pred_fallthru
      _
    // Predicated region
    $region29: #{tpu_custom_call.1} parent=1 // pred_check
      _
    $region30: #{tpu_custom_call.1} parent=1 // pred_check_branch
      %242 = sbr.rel (0) target = $region32
    $region31: #{tpu_custom_call.1} parent=1 // pred_region
      %243 = dma.done [#allocation4], 128
    $region32: #{tpu_custom_call.1} parent=1 // pred_fallthru
      _
    %244 = vsyncpa [#allocation3], 1
    %245 = vsyncpa [#allocation6], 1
    %246 = vsyncpa [#allocation4], 1

</llo_original>
